<compile_context>
chip_gen: v5e
topology: v5e:2x2
jax: 0.10.0
libtpu: 0.0.40
codegen_flags: <defaults>
</compile_context>

<pallas_src>
import functools

import jax
import jax.numpy as jnp
from jax.experimental import pallas as pl
from jax.experimental.pallas import tpu as pltpu

IN_FEATURES = 6
HIDDEN = 3


def mlp_kernel(w1_ref, b1_ref, w2_ref, b2_ref, xT_ref, o_ref):
    # xT_ref block: (6, TILE_B)  -- batch on lanes, features on sublanes.
    # Load the six feature rows once (reused across all hidden units).
    rows = [xT_ref[k:k + 1, :].astype(jnp.float32) for k in range(IN_FEATURES)]  # each (1, TILE_B)

    z = None
    for j in range(HIDDEN):
        # h_j = relu(sum_k x[k] * w1[k, j] + b1[j])   -- unrolled VPU MAC chain
        acc = rows[0] * w1_ref[0, j]
        for k in range(1, IN_FEATURES):
            acc = acc + rows[k] * w1_ref[k, j]
        h = jnp.maximum(acc + b1_ref[j], 0.0)
        # second layer folded in: z += h_j * w2[j, 0]
        contrib = h * w2_ref[j, 0]
        z = contrib if z is None else z + contrib

    o_ref[...] = jax.nn.sigmoid(z + b2_ref[0])  # (1, TILE_B), lane-dense store


@functools.partial(jax.jit, static_argnames=("tile_b",))
def mlp_forward(x, w1, b1, w2, b2, tile_b=1024):
    """x: (B, 6) -> (B, 1). Weights: w1 (6,3), b1 (3,), w2 (3,1), b2 (1,)."""
    B = x.shape[0]

    # Tile size: multiple of 128 lanes, clamped so tiny batches use one step.
    b_lanes = 128 * pl.cdiv(B, 128)
    tile = min(max(128, (tile_b // 128) * 128), b_lanes)
    num_tiles = pl.cdiv(B, tile)
    b_pad = tile * num_tiles

    # Wrapper-side layout plumbing: transpose so batch rides the lane axis, pad.
    xT = jnp.zeros((IN_FEATURES, b_pad), x.dtype).at[:, :B].set(x.T)

    out_flat = pl.pallas_call(
        mlp_kernel,
        out_shape=jax.ShapeDtypeStruct((1, b_pad), jnp.float32),
        grid=(num_tiles,),
        in_specs=[
            pl.BlockSpec(memory_space=pltpu.MemorySpace.SMEM),   # w1 (6,3) scalars
            pl.BlockSpec(memory_space=pltpu.MemorySpace.SMEM),   # b1 (3,)
            pl.BlockSpec(memory_space=pltpu.MemorySpace.SMEM),   # w2 (3,1)
            pl.BlockSpec(memory_space=pltpu.MemorySpace.SMEM),   # b2 (1,)
            pl.BlockSpec((IN_FEATURES, tile), lambda i: (0, i)),  # xT tile, pipelined
        ],
        out_specs=pl.BlockSpec((1, tile), lambda i: (0, i)),
        compiler_params=pltpu.CompilerParams(
            dimension_semantics=("parallel",),   # megacore sharding on v7x
        ),
    )(w1, b1, w2, b2, xT)

    # Back to the caller-facing (B, 1) layout (free reshape/slice outside kernel).
    return out_flat[0, :B][:, None]


def init_params(key):
    # Mimic nn.Linear's uniform(-1/sqrt(fan_in), 1/sqrt(fan_in)) init.
    k1, k2, k3, k4 = jax.random.split(key, 4)
    lim1 = 1.0 / jnp.sqrt(6.0)
    lim2 = 1.0 / jnp.sqrt(3.0)
    w1 = jax.random.uniform(k1, (IN_FEATURES, HIDDEN), jnp.float32, -lim1, lim1)  # (in, out)
    b1 = jax.random.uniform(k2, (HIDDEN,), jnp.float32, -lim1, lim1)
    w2 = jax.random.uniform(k3, (HIDDEN, 1), jnp.float32, -lim2, lim2)
    b2 = jax.random.uniform(k4, (1,), jnp.float32, -lim2, lim2)
    return w1, b1, w2, b2


if __name__ == "__main__":
    key = jax.random.PRNGKey(0)
    kx, kp = jax.random.split(key)

    B = 300  # small, non-multiple-of-128 batch to exercise tiling + padding
    x = jax.random.normal(kx, (B, IN_FEATURES), jnp.float32)
    w1, b1, w2, b2 = init_params(kp)

    # tile_b=128 forces a multi-step grid (3 tiles) even at this small batch.
    out = mlp_forward(x, w1, b1, w2, b2, tile_b=128)
    jax.block_until_ready(out)

    # Plain-JAX reference of the same forward pass.
    ref = jax.nn.sigmoid(jnp.maximum(x @ w1 + b1, 0.0) @ w2 + b2)
    assert out.shape == (B, 1)
    assert jnp.allclose(out, ref, atol=1e-5, rtol=1e-5)

    print("KERNEL_OK")
</pallas_src>

<mosaic_0001>
module attributes {stable_mosaic.version = 11 : i64} {
  func.func @mlp_kernel(%arg0: i32, %arg1: memref<6x3xf32, #tpu.memory_space<smem>>, %arg2: memref<3xf32, #tpu.memory_space<smem>>, %arg3: memref<3x1xf32, #tpu.memory_space<smem>>, %arg4: memref<1xf32, #tpu.memory_space<smem>>, %arg5: memref<6x128xf32, #tpu.memory_space<vmem>>, %arg6: memref<1x128xf32, #tpu.memory_space<vmem>>) attributes {dimension_semantics = [#tpu.dimension_semantics<parallel>], iteration_bounds = array<i64: 3>, scalar_prefetch = 0 : i64, scratch_operands = 0 : i64, tpu.core_type = #tpu.core_type<tc>, window_params = [{transform_indices = @transform_0, window_bounds = array<i64: 6, 3>}, {transform_indices = @transform_1, window_bounds = array<i64: 3>}, {transform_indices = @transform_2, window_bounds = array<i64: 3, 1>}, {transform_indices = @transform_3, window_bounds = array<i64: 1>}, {transform_indices = @transform_4, window_bounds = array<i64: 6, 128>}, {transform_indices = @transform_5, window_bounds = array<i64: 1, 128>}]} {
    %c0 = arith.constant 0 : index
    %c0_0 = arith.constant 0 : index
    %0 = vector.load %arg5[%c0, %c0_0] : memref<6x128xf32, #tpu.memory_space<vmem>>, vector<1x128xf32>
    %c1 = arith.constant 1 : index
    %c0_1 = arith.constant 0 : index
    %1 = vector.load %arg5[%c1, %c0_1] : memref<6x128xf32, #tpu.memory_space<vmem>>, vector<1x128xf32>
    %c2 = arith.constant 2 : index
    %c0_2 = arith.constant 0 : index
    %2 = vector.load %arg5[%c2, %c0_2] : memref<6x128xf32, #tpu.memory_space<vmem>>, vector<1x128xf32>
    %c3 = arith.constant 3 : index
    %c0_3 = arith.constant 0 : index
    %3 = vector.load %arg5[%c3, %c0_3] : memref<6x128xf32, #tpu.memory_space<vmem>>, vector<1x128xf32>
    %c4 = arith.constant 4 : index
    %c0_4 = arith.constant 0 : index
    %4 = vector.load %arg5[%c4, %c0_4] : memref<6x128xf32, #tpu.memory_space<vmem>>, vector<1x128xf32>
    %c5 = arith.constant 5 : index
    %c0_5 = arith.constant 0 : index
    %5 = vector.load %arg5[%c5, %c0_5] : memref<6x128xf32, #tpu.memory_space<vmem>>, vector<1x128xf32>
    %c0_6 = arith.constant 0 : index
    %c0_7 = arith.constant 0 : index
    %6 = memref.load %arg1[%c0_6, %c0_7] : memref<6x3xf32, #tpu.memory_space<smem>>
    %7 = vector.broadcast %6 : f32 to vector<1x128xf32>
    %8 = arith.mulf %0, %7 : vector<1x128xf32>
    %c1_8 = arith.constant 1 : index
    %c0_9 = arith.constant 0 : index
    %9 = memref.load %arg1[%c1_8, %c0_9] : memref<6x3xf32, #tpu.memory_space<smem>>
    %10 = vector.broadcast %9 : f32 to vector<1x128xf32>
    %11 = arith.mulf %1, %10 : vector<1x128xf32>
    %12 = arith.addf %8, %11 : vector<1x128xf32>
    %c2_10 = arith.constant 2 : index
    %c0_11 = arith.constant 0 : index
    %13 = memref.load %arg1[%c2_10, %c0_11] : memref<6x3xf32, #tpu.memory_space<smem>>
    %14 = vector.broadcast %13 : f32 to vector<1x128xf32>
    %15 = arith.mulf %2, %14 : vector<1x128xf32>
    %16 = arith.addf %12, %15 : vector<1x128xf32>
    %c3_12 = arith.constant 3 : index
    %c0_13 = arith.constant 0 : index
    %17 = memref.load %arg1[%c3_12, %c0_13] : memref<6x3xf32, #tpu.memory_space<smem>>
    %18 = vector.broadcast %17 : f32 to vector<1x128xf32>
    %19 = arith.mulf %3, %18 : vector<1x128xf32>
    %20 = arith.addf %16, %19 : vector<1x128xf32>
    %c4_14 = arith.constant 4 : index
    %c0_15 = arith.constant 0 : index
    %21 = memref.load %arg1[%c4_14, %c0_15] : memref<6x3xf32, #tpu.memory_space<smem>>
    %22 = vector.broadcast %21 : f32 to vector<1x128xf32>
    %23 = arith.mulf %4, %22 : vector<1x128xf32>
    %24 = arith.addf %20, %23 : vector<1x128xf32>
    %c5_16 = arith.constant 5 : index
    %c0_17 = arith.constant 0 : index
    %25 = memref.load %arg1[%c5_16, %c0_17] : memref<6x3xf32, #tpu.memory_space<smem>>
    %26 = vector.broadcast %25 : f32 to vector<1x128xf32>
    %27 = arith.mulf %5, %26 : vector<1x128xf32>
    %28 = arith.addf %24, %27 : vector<1x128xf32>
    %c0_18 = arith.constant 0 : index
    %29 = memref.load %arg2[%c0_18] : memref<3xf32, #tpu.memory_space<smem>>
    %30 = vector.broadcast %29 : f32 to vector<1x128xf32>
    %31 = arith.addf %28, %30 : vector<1x128xf32>
    %cst = arith.constant 0.000000e+00 : f32
    %32 = vector.broadcast %cst : f32 to vector<1x128xf32>
    %33 = arith.maximumf %31, %32 : vector<1x128xf32>
    %c0_19 = arith.constant 0 : index
    %c0_20 = arith.constant 0 : index
    %34 = memref.load %arg3[%c0_19, %c0_20] : memref<3x1xf32, #tpu.memory_space<smem>>
    %35 = vector.broadcast %34 : f32 to vector<1x128xf32>
    %36 = arith.mulf %33, %35 : vector<1x128xf32>
    %c0_21 = arith.constant 0 : index
    %c1_22 = arith.constant 1 : index
    %37 = memref.load %arg1[%c0_21, %c1_22] : memref<6x3xf32, #tpu.memory_space<smem>>
    %38 = vector.broadcast %37 : f32 to vector<1x128xf32>
    %39 = arith.mulf %0, %38 : vector<1x128xf32>
    %c1_23 = arith.constant 1 : index
    %c1_24 = arith.constant 1 : index
    %40 = memref.load %arg1[%c1_23, %c1_24] : memref<6x3xf32, #tpu.memory_space<smem>>
    %41 = vector.broadcast %40 : f32 to vector<1x128xf32>
    %42 = arith.mulf %1, %41 : vector<1x128xf32>
    %43 = arith.addf %39, %42 : vector<1x128xf32>
    %c2_25 = arith.constant 2 : index
    %c1_26 = arith.constant 1 : index
    %44 = memref.load %arg1[%c2_25, %c1_26] : memref<6x3xf32, #tpu.memory_space<smem>>
    %45 = vector.broadcast %44 : f32 to vector<1x128xf32>
    %46 = arith.mulf %2, %45 : vector<1x128xf32>
    %47 = arith.addf %43, %46 : vector<1x128xf32>
    %c3_27 = arith.constant 3 : index
    %c1_28 = arith.constant 1 : index
    %48 = memref.load %arg1[%c3_27, %c1_28] : memref<6x3xf32, #tpu.memory_space<smem>>
    %49 = vector.broadcast %48 : f32 to vector<1x128xf32>
    %50 = arith.mulf %3, %49 : vector<1x128xf32>
    %51 = arith.addf %47, %50 : vector<1x128xf32>
    %c4_29 = arith.constant 4 : index
    %c1_30 = arith.constant 1 : index
    %52 = memref.load %arg1[%c4_29, %c1_30] : memref<6x3xf32, #tpu.memory_space<smem>>
    %53 = vector.broadcast %52 : f32 to vector<1x128xf32>
    %54 = arith.mulf %4, %53 : vector<1x128xf32>
    %55 = arith.addf %51, %54 : vector<1x128xf32>
    %c5_31 = arith.constant 5 : index
    %c1_32 = arith.constant 1 : index
    %56 = memref.load %arg1[%c5_31, %c1_32] : memref<6x3xf32, #tpu.memory_space<smem>>
    %57 = vector.broadcast %56 : f32 to vector<1x128xf32>
    %58 = arith.mulf %5, %57 : vector<1x128xf32>
    %59 = arith.addf %55, %58 : vector<1x128xf32>
    %c1_33 = arith.constant 1 : index
    %60 = memref.load %arg2[%c1_33] : memref<3xf32, #tpu.memory_space<smem>>
    %61 = vector.broadcast %60 : f32 to vector<1x128xf32>
    %62 = arith.addf %59, %61 : vector<1x128xf32>
    %cst_34 = arith.constant 0.000000e+00 : f32
    %63 = vector.broadcast %cst_34 : f32 to vector<1x128xf32>
    %64 = arith.maximumf %62, %63 : vector<1x128xf32>
    %c1_35 = arith.constant 1 : index
    %c0_36 = arith.constant 0 : index
    %65 = memref.load %arg3[%c1_35, %c0_36] : memref<3x1xf32, #tpu.memory_space<smem>>
    %66 = vector.broadcast %65 : f32 to vector<1x128xf32>
    %67 = arith.mulf %64, %66 : vector<1x128xf32>
    %68 = arith.addf %36, %67 : vector<1x128xf32>
    %c0_37 = arith.constant 0 : index
    %c2_38 = arith.constant 2 : index
    %69 = memref.load %arg1[%c0_37, %c2_38] : memref<6x3xf32, #tpu.memory_space<smem>>
    %70 = vector.broadcast %69 : f32 to vector<1x128xf32>
    %71 = arith.mulf %0, %70 : vector<1x128xf32>
    %c1_39 = arith.constant 1 : index
    %c2_40 = arith.constant 2 : index
    %72 = memref.load %arg1[%c1_39, %c2_40] : memref<6x3xf32, #tpu.memory_space<smem>>
    %73 = vector.broadcast %72 : f32 to vector<1x128xf32>
    %74 = arith.mulf %1, %73 : vector<1x128xf32>
    %75 = arith.addf %71, %74 : vector<1x128xf32>
    %c2_41 = arith.constant 2 : index
    %c2_42 = arith.constant 2 : index
    %76 = memref.load %arg1[%c2_41, %c2_42] : memref<6x3xf32, #tpu.memory_space<smem>>
    %77 = vector.broadcast %76 : f32 to vector<1x128xf32>
    %78 = arith.mulf %2, %77 : vector<1x128xf32>
    %79 = arith.addf %75, %78 : vector<1x128xf32>
    %c3_43 = arith.constant 3 : index
    %c2_44 = arith.constant 2 : index
    %80 = memref.load %arg1[%c3_43, %c2_44] : memref<6x3xf32, #tpu.memory_space<smem>>
    %81 = vector.broadcast %80 : f32 to vector<1x128xf32>
    %82 = arith.mulf %3, %81 : vector<1x128xf32>
    %83 = arith.addf %79, %82 : vector<1x128xf32>
    %c4_45 = arith.constant 4 : index
    %c2_46 = arith.constant 2 : index
    %84 = memref.load %arg1[%c4_45, %c2_46] : memref<6x3xf32, #tpu.memory_space<smem>>
    %85 = vector.broadcast %84 : f32 to vector<1x128xf32>
    %86 = arith.mulf %4, %85 : vector<1x128xf32>
    %87 = arith.addf %83, %86 : vector<1x128xf32>
    %c5_47 = arith.constant 5 : index
    %c2_48 = arith.constant 2 : index
    %88 = memref.load %arg1[%c5_47, %c2_48] : memref<6x3xf32, #tpu.memory_space<smem>>
    %89 = vector.broadcast %88 : f32 to vector<1x128xf32>
    %90 = arith.mulf %5, %89 : vector<1x128xf32>
    %91 = arith.addf %87, %90 : vector<1x128xf32>
    %c2_49 = arith.constant 2 : index
    %92 = memref.load %arg2[%c2_49] : memref<3xf32, #tpu.memory_space<smem>>
    %93 = vector.broadcast %92 : f32 to vector<1x128xf32>
    %94 = arith.addf %91, %93 : vector<1x128xf32>
    %cst_50 = arith.constant 0.000000e+00 : f32
    %95 = vector.broadcast %cst_50 : f32 to vector<1x128xf32>
    %96 = arith.maximumf %94, %95 : vector<1x128xf32>
    %c2_51 = arith.constant 2 : index
    %c0_52 = arith.constant 0 : index
    %97 = memref.load %arg3[%c2_51, %c0_52] : memref<3x1xf32, #tpu.memory_space<smem>>
    %98 = vector.broadcast %97 : f32 to vector<1x128xf32>
    %99 = arith.mulf %96, %98 : vector<1x128xf32>
    %100 = arith.addf %68, %99 : vector<1x128xf32>
    %c0_53 = arith.constant 0 : index
    %101 = memref.load %arg4[%c0_53] : memref<1xf32, #tpu.memory_space<smem>>
    %102 = vector.broadcast %101 : f32 to vector<1x128xf32>
    %103 = arith.addf %100, %102 : vector<1x128xf32>
    %104 = arith.negf %103 : vector<1x128xf32>
    %105 = math.exp %104 : vector<1x128xf32>
    %cst_54 = arith.constant 1.000000e+00 : f32
    %106 = vector.broadcast %cst_54 : f32 to vector<1x128xf32>
    %107 = arith.addf %106, %105 : vector<1x128xf32>
    %108 = arith.divf %106, %107 : vector<1x128xf32>
    %c0_55 = arith.constant 0 : index
    %c0_56 = arith.constant 0 : index
    %109 = vector.load %arg6[%c0_55, %c0_56] : memref<1x128xf32, #tpu.memory_space<vmem>>, vector<1x128xf32>
    tpu.vector_store %arg6[%c0_55, %c0_56], %108 {strides = array<i32>} : memref<1x128xf32, #tpu.memory_space<vmem>>, vector<1x128xf32>,
    return
  }
  func.func @transform_0(%arg0: i32) -> (i32, i32) {
    %c0_i32 = arith.constant 0 : i32
    %c0_i32_0 = arith.constant 0 : i32
    %c0_i32_1 = arith.constant 0 : i32
    return %c0_i32, %c0_i32_0 : i32, i32
  }
  func.func @transform_1(%arg0: i32) -> i32 {
    %c0_i32 = arith.constant 0 : i32
    %c0_i32_0 = arith.constant 0 : i32
    return %c0_i32 : i32
  }
  func.func @transform_2(%arg0: i32) -> (i32, i32) {
    %c0_i32 = arith.constant 0 : i32
    %c0_i32_0 = arith.constant 0 : i32
    %c0_i32_1 = arith.constant 0 : i32
    return %c0_i32, %c0_i32_0 : i32, i32
  }
  func.func @transform_3(%arg0: i32) -> i32 {
    %c0_i32 = arith.constant 0 : i32
    %c0_i32_0 = arith.constant 0 : i32
    return %c0_i32 : i32
  }
  func.func @transform_4(%arg0: i32) -> (i32, i32) {
    %c0_i32 = arith.constant 0 : i32
    %c0_i32_0 = arith.constant 0 : i32
    return %c0_i32, %arg0 : i32, i32
  }
  func.func @transform_5(%arg0: i32) -> (i32, i32) {
    %c0_i32 = arith.constant 0 : i32
    %c0_i32_0 = arith.constant 0 : i32
    return %c0_i32, %arg0 : i32, i32
  }
}

</mosaic_0001>

<llo_original>
// kernel: mlp_forward.1
$region0: #{mlp_forward.1}
  #allocation0 [shape = 'u32[]', space=smem, size = 0x4, offset = 0x4, fixed_abs, tag = 'smem constant byte address 0x4 - core index']
  #allocation1 [shape = 'u32[72,128]{1,0:T(1,128)}', space=vmem, size = 0x9000, scoped, tag = 'internal scratch']
  #allocation2 [shape = 'f32[1]{0:T(128)S(6)}', space=smem, size = 0x200, scoped, tag = 'scoped memory for mlp_forward.1']
  %s0 = inlined_call_operand.vmem [shape: f32[6,3], index: 0, kind: input, shape index: {}]
  %s1 = inlined_call_operand.vmem [shape: f32[3], index: 1, kind: input, shape index: {}]
  %s2 = inlined_call_operand.vmem [shape: f32[3,1], index: 2, kind: input, shape index: {}]
  %s3 = inlined_call_operand.<no memory space> [shape: f32[1], index: 3, kind: input, shape index: {}]
  %s4 = inlined_call_operand.vmem [shape: f32[6,384], index: 4, kind: input, shape index: {}]
  %s5 = inlined_call_operand.vmem [shape: f32[1,384], index: 5, kind: output, shape index: {}]
  %s6 = sld [smem:[#allocation0]]
  $region65: #{mlp_forward.1} parent=0
    _
  %s8 = ssub.s32 1, %s6
  %s9 = scalar_select 0, %s8, %s6
  %10 = sst [smem:[#allocation2]] %s3
  $region1: #{mlp_forward.1} parent=0
    #allocation3 [shape = 'u8[4096]{0}', space=smem, size = 0x1000, scoped, tag = 'input window, operand 0, single buffered']
    #allocation4 [shape = 's32[2]{0}', space=sflag, size = 0x8, scoped, tag = 'scoped memory for mlp_forward.1']
    #allocation5 [shape = 'u8[512]{0}', space=smem, size = 0x200, scoped, tag = 'input window, operand 1, single buffered']
    #allocation6 [shape = 's32[1]{0}', space=sflag, size = 0x4, scoped, tag = 'scoped memory for mlp_forward.1']
    #allocation7 [shape = 'u8[2048]{0}', space=smem, size = 0x800, scoped, tag = 'input window, operand 2, single buffered']
    %11 = vsyncpa [#allocation4], 0
    %12 = vsyncpa [#allocation6], 0
    loop: start=0, step=1, limit=5
    $region2: #{mlp_forward.1} parent=1 // loop_pre_header
      _
    $region3: #{mlp_forward.1} parent=1 // loop_header
      %s14 = sphi 0, %s18
      %p15 = scmp.ge.s32.totalorder %s14, 5
      %s22 = sphi 0, %s22
      %s24 = sphi 0, %s22
      %s25 = sphi 0, %s24
      %s39 = sphi 0, %s25
      %s43 = sphi 0, %s43
      %s45 = sphi 0, %s43
      %s46 = sphi 0, %s45
      %s60 = sphi 0, %s46
      %s64 = sphi 0, %s64
      %s66 = sphi 0, %s64
      %s67 = sphi 0, %s66
      %s81 = sphi 0, %s67
      %s85 = sphi 0, %s85
      %s87 = sphi 0, %s85
      %s88 = sphi 0, %s87
      %s102 = sphi 0, %s88
      %s108 = sphi 0, %s110
      %s111 = sphi 0, %s108
      %s112 = sphi 0, %s111
      %s128 = sphi 0, %s112
      %s134 = sphi 0, %s136
      %s137 = sphi 0, %s134
      %s138 = sphi 0, %s137
      %s154 = sphi 0, %s138
    $region4: #{mlp_forward.1} parent=1 // loop_header_branch
      %17 = sbr.rel (%p15) target = $region8
    $region5: #{mlp_forward.1} parent=1 // loop_body
      %s19 = ssub.s32 %s14, 1
      %s20 = ssub.s32 %s14, 2
      %s21 = sadd.s32 %s14, 1
      %s23 = sadd.s32 %s22, 1
      %p26 = scmp.eq.s32.totalorder %s14, 2
      %p27 = scmp.ne.s32.totalorder %s22, %s24
      %p28 = scmp.eq.s32.totalorder %s14, 0
      %p29 = por %p27, %p28
      %p30 = scmp.ne.s32.totalorder %s22, %s24
      %p31 = scmp.eq.s32.totalorder %s19, 2
      %p32 = por %p30, %p31
      %p33 = scmp.ne.s32.totalorder %s24, %s25
      %p34 = scmp.eq.s32.totalorder %s19, 0
      %p35 = por %p33, %p34
      %p36 = scmp.ne.s32.totalorder %s24, %s25
      %p37 = scmp.eq.s32.totalorder %s20, 2
      %p38 = por %p36, %p37
      %p40 = scmp.ne.s32.totalorder %s25, %s39
      %p41 = scmp.eq.s32.totalorder %s20, 0
      %p42 = por %p40, %p41
      %s44 = sadd.s32 %s43, 1
      %p47 = scmp.eq.s32.totalorder %s14, 2
      %p48 = scmp.ne.s32.totalorder %s43, %s45
      %p49 = scmp.eq.s32.totalorder %s14, 0
      %p50 = por %p48, %p49
      %p51 = scmp.ne.s32.totalorder %s43, %s45
      %p52 = scmp.eq.s32.totalorder %s19, 2
      %p53 = por %p51, %p52
      %p54 = scmp.ne.s32.totalorder %s45, %s46
      %p55 = scmp.eq.s32.totalorder %s19, 0
      %p56 = por %p54, %p55
      %p57 = scmp.ne.s32.totalorder %s45, %s46
      %p58 = scmp.eq.s32.totalorder %s20, 2
      %p59 = por %p57, %p58
      %p61 = scmp.ne.s32.totalorder %s46, %s60
      %p62 = scmp.eq.s32.totalorder %s20, 0
      %p63 = por %p61, %p62
      %s65 = sadd.s32 %s64, 1
      %p68 = scmp.eq.s32.totalorder %s14, 2
      %p69 = scmp.ne.s32.totalorder %s64, %s66
      %p70 = scmp.eq.s32.totalorder %s14, 0
      %p71 = por %p69, %p70
      %p72 = scmp.ne.s32.totalorder %s64, %s66
      %p73 = scmp.eq.s32.totalorder %s19, 2
      %p74 = por %p72, %p73
      %p75 = scmp.ne.s32.totalorder %s66, %s67
      %p76 = scmp.eq.s32.totalorder %s19, 0
      %p77 = por %p75, %p76
      %p78 = scmp.ne.s32.totalorder %s66, %s67
      %p79 = scmp.eq.s32.totalorder %s20, 2
      %p80 = por %p78, %p79
      %p82 = scmp.ne.s32.totalorder %s67, %s81
      %p83 = scmp.eq.s32.totalorder %s20, 0
      %p84 = por %p82, %p83
      %s86 = sadd.s32 %s85, 1
      %p89 = scmp.eq.s32.totalorder %s14, 2
      %p90 = scmp.ne.s32.totalorder %s85, %s87
      %p91 = scmp.eq.s32.totalorder %s14, 0
      %p92 = por %p90, %p91
      %p93 = scmp.ne.s32.totalorder %s85, %s87
      %p94 = scmp.eq.s32.totalorder %s19, 2
      %p95 = por %p93, %p94
      %p96 = scmp.ne.s32.totalorder %s87, %s88
      %p97 = scmp.eq.s32.totalorder %s19, 0
      %p98 = por %p96, %p97
      %p99 = scmp.ne.s32.totalorder %s87, %s88
      %p100 = scmp.eq.s32.totalorder %s20, 2
      %p101 = por %p99, %p100
      %p103 = scmp.ne.s32.totalorder %s88, %s102
      %p104 = scmp.eq.s32.totalorder %s20, 0
      %p105 = por %p103, %p104
      %s106 = ssub.s32 %s14, %s21
      %p107 = scmp.eq.s32.totalorder %s106, 0
      %s109 = sadd.s32 %s108, 1
      %s110 = scalar_select %p107, %s108, %s109
      %p113 = pneg %p107
      %p114 = scmp.eq.s32.totalorder %s14, 2
      %p115 = por %p113, %p114
      %p116 = scmp.ne.s32.totalorder %s108, %s111
      %p117 = scmp.eq.s32.totalorder %s14, 0
      %p118 = por %p116, %p117
      %p119 = scmp.ne.s32.totalorder %s108, %s111
      %p120 = scmp.eq.s32.totalorder %s19, 2
      %p121 = por %p119, %p120
      %p122 = scmp.ne.s32.totalorder %s111, %s112
      %p123 = scmp.eq.s32.totalorder %s19, 0
      %p124 = por %p122, %p123
      %p125 = scmp.ne.s32.totalorder %s111, %s112
      %p126 = scmp.eq.s32.totalorder %s20, 2
      %p127 = por %p125, %p126
      %p129 = scmp.ne.s32.totalorder %s112, %s128
      %p130 = scmp.eq.s32.totalorder %s20, 0
      %p131 = por %p129, %p130
      %s132 = ssub.s32 %s14, %s21
      %p133 = scmp.eq.s32.totalorder %s132, 0
      %s135 = sadd.s32 %s134, 1
      %s136 = scalar_select %p133, %s134, %s135
      %p139 = pneg %p133
      %p140 = scmp.eq.s32.totalorder %s14, 2
      %p141 = por %p139, %p140
      %p142 = scmp.ne.s32.totalorder %s134, %s137
      %p143 = scmp.eq.s32.totalorder %s14, 0
      %p144 = por %p142, %p143
      %p145 = scmp.ne.s32.totalorder %s134, %s137
      %p146 = scmp.eq.s32.totalorder %s19, 2
      %p147 = por %p145, %p146
      %p148 = scmp.ne.s32.totalorder %s137, %s138
      %p149 = scmp.eq.s32.totalorder %s19, 0
      %p150 = por %p148, %p149
      %p151 = scmp.ne.s32.totalorder %s137, %s138
      %p152 = scmp.eq.s32.totalorder %s20, 2
      %p153 = por %p151, %p152
      %p155 = scmp.ne.s32.totalorder %s138, %s154
      %p156 = scmp.eq.s32.totalorder %s20, 0
      %p157 = por %p155, %p156
      %p158 = scmp.le.s32.totalorder 1, %s14
      %p159 = scmp.lt.s32.totalorder %s14, 4
      %p160 = pnand %p158, %p159
      %p161 = pneg %p160
      // Predicated region
      $region9: #{mlp_forward.1} parent=5 // pred_check
        _
      $region10: #{mlp_forward.1} parent=5 // pred_check_branch
        %163 = sbr.rel (%p160) target = $region12
      $region11: #{mlp_forward.1} parent=5 // pred_region
        %s164 = ssub.s32 %s14, 1
        // Predicated region
        $region13: #{mlp_forward.1} parent=11 // pred_check
          %p165 = pneg %p35
        $region14: #{mlp_forward.1} parent=11 // pred_check_branch
          %167 = sbr.rel (%p165) target = $region16
        $region15: #{mlp_forward.1} parent=11 // pred_region
          %169 = vsyncadd [#allocation4], 0
          %s171 = sshll.u32 %s0, 4
          %s172 = int_to_ptr.vmem [resolvable:$true] %s171
          %174 = dma.vmem_to_smem %s172, 128, [#allocation3], [#allocation4]
        $region16: #{mlp_forward.1} parent=11 // pred_fallthru
          _
        // Predicated region
        $region17: #{mlp_forward.1} parent=11 // pred_check
          %p175 = pneg %p56
        $region18: #{mlp_forward.1} parent=11 // pred_check_branch
          %177 = sbr.rel (%p175) target = $region20
        $region19: #{mlp_forward.1} parent=11 // pred_region
          %179 = vsyncadd [#allocation6], 0
          %s181 = sshll.u32 %s1, 4
          %s182 = int_to_ptr.vmem [resolvable:$true] %s181
          %184 = dma.vmem_to_smem %s182, 16, [#allocation5], [#allocation6]
        $region20: #{mlp_forward.1} parent=11 // pred_fallthru
          _
        // Predicated region
        $region21: #{mlp_forward.1} parent=11 // pred_check
          %p185 = pneg %p77
        $region22: #{mlp_forward.1} parent=11 // pred_check_branch
          %187 = sbr.rel (%p185) target = $region24
        $region23: #{mlp_forward.1} parent=11 // pred_region
          %189 = vsyncadd [#allocation6], 0
          %s191 = sshll.u32 %s2, 4
          %s192 = int_to_ptr.vmem [resolvable:$true] %s191
          %194 = dma.vmem_to_smem %s192, 64, [#allocation7], [#allocation6]
        $region24: #{mlp_forward.1} parent=11 // pred_fallthru
          _
        // Predicated region
        $region25: #{mlp_forward.1} parent=11 // pred_check
          %p195 = pneg %p98
        $region26: #{mlp_forward.1} parent=11 // pred_check_branch
          %197 = sbr.rel (%p195) target = $region28
        $region27: #{mlp_forward.1} parent=11 // pred_region
          _
        $region28: #{mlp_forward.1} parent=11 // pred_fallthru
          _
      $region12: #{mlp_forward.1} parent=5 // pred_fallthru
        _
      %p198 = scmp.lt.s32.totalorder %s14, 3
      // Predicated region
      $region29: #{mlp_forward.1} parent=5 // pred_check
        %p199 = pneg %p198
      $region30: #{mlp_forward.1} parent=5 // pred_check_branch
        %201 = sbr.rel (%p199) target = $region32
      $region31: #{mlp_forward.1} parent=5 // pred_region
        // Predicated region
        $region33: #{mlp_forward.1} parent=31 // pred_check
          %p202 = pneg %p118
        $region34: #{mlp_forward.1} parent=31 // pred_check_branch
          %204 = sbr.rel (%p202) target = $region36
        $region35: #{mlp_forward.1} parent=31 // pred_region
          %p205 = scmp.lt.s32.totalorder %s14, 2
          %s206 = scalar_select %p205, %s14, 2
          %s207 = smul.addr %s206, 8
          %s208 = scalar_lea.vmem %s4, %s207
        $region36: #{mlp_forward.1} parent=31 // pred_fallthru
          _
      $region32: #{mlp_forward.1} parent=5 // pred_fallthru
        _
      %p209 = scmp.le.s32.totalorder 1, %s14
      %p210 = scmp.lt.s32.totalorder %s14, 4
      %p211 = pnand %p209, %p210
      %p212 = pneg %p211
      // Predicated region
      $region37: #{mlp_forward.1} parent=5 // pred_check
        _
      $region38: #{mlp_forward.1} parent=5 // pred_check_branch
        %214 = sbr.rel (%p211) target = $region40
      $region39: #{mlp_forward.1} parent=5 // pred_region
        %s215 = ssub.s32 %s14, 1
        // Predicated region
        $region41: #{mlp_forward.1} parent=39 // pred_check
          %p216 = pneg %p35
        $region42: #{mlp_forward.1} parent=39 // pred_check_branch
          %218 = sbr.rel (%p216) target = $region44
        $region43: #{mlp_forward.1} parent=39 // pred_region
          %220 = dma.done [#allocation4], 128
        $region44: #{mlp_forward.1} parent=39 // pred_fallthru
          _
        // Predicated region
        $region45: #{mlp_forward.1} parent=39 // pred_check
          %p221 = pneg %p56
        $region46: #{mlp_forward.1} parent=39 // pred_check_branch
          %223 = sbr.rel (%p221) target = $region48
        $region47: #{mlp_forward.1} parent=39 // pred_region
          %225 = dma.done [#allocation6], 16
        $region48: #{mlp_forward.1} parent=39 // pred_fallthru
          _
        // Predicated region
        $region49: #{mlp_forward.1} parent=39 // pred_check
          %p226 = pneg %p77
        $region50: #{mlp_forward.1} parent=39 // pred_check_branch
          %228 = sbr.rel (%p226) target = $region52
        $region51: #{mlp_forward.1} parent=39 // pred_region
          %230 = dma.done [#allocation6], 64
        $region52: #{mlp_forward.1} parent=39 // pred_fallthru
          _
        %231 = sfence
        %p232 = pneg %p35
        %p233 = pneg %p32
        %p234 = pneg %p56
        %p235 = pneg %p53
        %p236 = pneg %p77
        %p237 = pneg %p74
        %p238 = pneg %p98
        %p239 = pneg %p95
        %p240 = scmp.lt.s32.totalorder %s19, 2
        %s241 = scalar_select %p240, %s19, 2
        %s242 = smul.addr %s241, 8
        %s243 = scalar_lea.vmem %s4, %s242
        %p244 = pneg %p124
        %p245 = pneg %p121
        %p246 = pneg %p150
        %p247 = pneg %p147
        %p248 = scmp.lt.s32.totalorder %s19, 2
        %s249 = scalar_select %p248, %s19, 2
        %s250 = scalar_lea.vmem %s5, %s249
        %p251 = scmp.lt.s32.totalorder %s19, 2
        %s252 = scalar_select %p251, %s19, 2
        %s253 = smul.addr %s252, 8
        %s254 = scalar_lea.vmem %s4, %s253
        %p255 = scmp.lt.s32.totalorder %s19, 2
        %s256 = scalar_select %p255, %s19, 2
        %s257 = scalar_lea.vmem %s5, %s256
        %v258 = vld [vmem:[%s254] sm:$0x1]
        %v259 = vld [vmem:[%s254 + $0x1] sm:$0x1]
        %v260 = vld [vmem:[%s254 + $0x2] sm:$0x1]
        %v261 = vld [vmem:[%s254 + $0x3] sm:$0x1]
        %v262 = vld [vmem:[%s254 + $0x4] sm:$0x1]
        %v263 = vld [vmem:[%s254 + $0x5] sm:$0x1]
        %s264 = sld [smem:[#allocation3]]
        %v265 = vstv %s264
        %v266 = vmul.f32 %v258, %v265
        %s267 = sld [smem:[#allocation3 + $0x80]]
        %v268 = vstv %s267
        %v269 = vmul.f32 %v259, %v268
        %v270 = vadd.f32 %v266, %v269
        %s271 = sld [smem:[#allocation3 + $0x100]]
        %v272 = vstv %s271
        %v273 = vmul.f32 %v260, %v272
        %v274 = vadd.f32 %v270, %v273
        %s275 = sld [smem:[#allocation3 + $0x180]]
        %v276 = vstv %s275
        %v277 = vmul.f32 %v261, %v276
        %v278 = vadd.f32 %v274, %v277
        %s279 = sld [smem:[#allocation3 + $0x200]]
        %v280 = vstv %s279
        %v281 = vmul.f32 %v262, %v280
        %v282 = vadd.f32 %v278, %v281
        %s283 = sld [smem:[#allocation3 + $0x280]]
        %v284 = vstv %s283
        %v285 = vmul.f32 %v263, %v284
        %v286 = vadd.f32 %v282, %v285
        %s287 = sld [smem:[#allocation5]]
        %v288 = vstv %s287
        %v289 = vadd.f32 %v286, %v288
        %v290 = vmax.f32 %v289, 0.0
        %s291 = sld [smem:[#allocation7]]
        %v292 = vstv %s291
        %v293 = vmul.f32 %v290, %v292
        %s294 = sld [smem:[#allocation3 + $0x1]]
        %v295 = vstv %s294
        %v296 = vmul.f32 %v258, %v295
        %s297 = sld [smem:[#allocation3 + $0x81]]
        %v298 = vstv %s297
        %v299 = vmul.f32 %v259, %v298
        %v300 = vadd.f32 %v296, %v299
        %s301 = sld [smem:[#allocation3 + $0x101]]
        %v302 = vstv %s301
        %v303 = vmul.f32 %v260, %v302
        %v304 = vadd.f32 %v300, %v303
        %s305 = sld [smem:[#allocation3 + $0x181]]
        %v306 = vstv %s305
        %v307 = vmul.f32 %v261, %v306
        %v308 = vadd.f32 %v304, %v307
        %s309 = sld [smem:[#allocation3 + $0x201]]
        %v310 = vstv %s309
        %v311 = vmul.f32 %v262, %v310
        %v312 = vadd.f32 %v308, %v311
        %s313 = sld [smem:[#allocation3 + $0x281]]
        %v314 = vstv %s313
        %v315 = vmul.f32 %v263, %v314
        %v316 = vadd.f32 %v312, %v315
        %s317 = sld [smem:[#allocation5 + $0x1]]
        %v318 = vstv %s317
        %v319 = vadd.f32 %v316, %v318
        %v320 = vmax.f32 %v319, 0.0
        %s321 = sld [smem:[#allocation7 + $0x80]]
        %v322 = vstv %s321
        %v323 = vmul.f32 %v320, %v322
        %v324 = vadd.f32 %v293, %v323
        %s325 = sld [smem:[#allocation3 + $0x2]]
        %v326 = vstv %s325
        %v327 = vmul.f32 %v258, %v326
        %s328 = sld [smem:[#allocation3 + $0x82]]
        %v329 = vstv %s328
        %v330 = vmul.f32 %v259, %v329
        %v331 = vadd.f32 %v327, %v330
        %s332 = sld [smem:[#allocation3 + $0x102]]
        %v333 = vstv %s332
        %v334 = vmul.f32 %v260, %v333
        %v335 = vadd.f32 %v331, %v334
        %s336 = sld [smem:[#allocation3 + $0x182]]
        %v337 = vstv %s336
        %v338 = vmul.f32 %v261, %v337
        %v339 = vadd.f32 %v335, %v338
        %s340 = sld [smem:[#allocation3 + $0x202]]
        %v341 = vstv %s340
        %v342 = vmul.f32 %v262, %v341
        %v343 = vadd.f32 %v339, %v342
        %s344 = sld [smem:[#allocation3 + $0x282]]
        %v345 = vstv %s344
        %v346 = vmul.f32 %v263, %v345
        %v347 = vadd.f32 %v343, %v346
        %s348 = sld [smem:[#allocation5 + $0x2]]
        %v349 = vstv %s348
        %v350 = vadd.f32 %v347, %v349
        %v351 = vmax.f32 %v350, 0.0
        %s352 = sld [smem:[#allocation7 + $0x100]]
        %v353 = vstv %s352
        %v354 = vmul.f32 %v351, %v353
        %v355 = vadd.f32 %v324, %v354
        %s356 = sld [smem:[#allocation2]]
        %v357 = vstv %s356
        %v358 = vadd.f32 %v355, %v357
        %v359 = vxor.u32 %v358, 2147483648
        %v360 = vmul.f32 %v359, 1.442695
        %v361 = vpow.pop %v360
        %v362 = vadd.f32 %v361, 1.0
        %v363 = vrcp.pop %v362
        %v364 = vmul.f32 %v362, %v363
        %v365 = vsub.f32 1.0, %v364
        %v366 = vmul.f32 %v363, %v365
        %v367 = vadd.f32 %v363, %v366
        %vm368 = vweird.f32 %v362
        %vm369 = vweird.f32 %v363
        %vm370 = vmor %vm368, %vm369
        %v371 = vsel %vm370, %v363, %v367
        %v372 = vand.u32 2147483647, %v362
        %vm373 = vcmp.eq.f32.partialorder %v372, 8.507059e+37
        %v374 = vand.u32 %v362, 2147483648
        %v375 = vor.u32 1.1754944e-38, %v374
        %v376 = vsel %vm373, %v375, %v371
        %v377 = vmul.f32 1.0, %v376
        %378 = vst [vmem:[%s257] sm:$0x1] %v377
        %p379 = scmp.lt.s32.totalorder %s19, 2
        %s380 = scalar_select %p379, %s19, 2
        %s381 = scalar_lea.vmem %s5, %s380
        // Predicated region
        $region53: #{mlp_forward.1} parent=39 // pred_check
          %p382 = pneg %p147
        $region54: #{mlp_forward.1} parent=39 // pred_check_branch
          %384 = sbr.rel (%p382) target = $region56
        $region55: #{mlp_forward.1} parent=39 // pred_region
          _
        $region56: #{mlp_forward.1} parent=39 // pred_fallthru
          _
      $region40: #{mlp_forward.1} parent=5 // pred_fallthru
        _
      %p385 = scmp.le.s32.totalorder 2, %s14
      // Predicated region
      $region57: #{mlp_forward.1} parent=5 // pred_check
        %p386 = pneg %p385
      $region58: #{mlp_forward.1} parent=5 // pred_check_branch
        %388 = sbr.rel (%p386) target = $region60
      $region59: #{mlp_forward.1} parent=5 // pred_region
        %s389 = ssub.s32 %s14, 2
        // Predicated region
        $region61: #{mlp_forward.1} parent=59 // pred_check
          %p390 = pneg %p153
        $region62: #{mlp_forward.1} parent=59 // pred_check_branch
          %392 = sbr.rel (%p390) target = $region64
        $region63: #{mlp_forward.1} parent=59 // pred_region
          %p393 = scmp.lt.s32.totalorder %s20, 2
          %s394 = scalar_select %p393, %s20, 2
          %s395 = scalar_lea.vmem %s5, %s394
        $region64: #{mlp_forward.1} parent=59 // pred_fallthru
          _
      $region60: #{mlp_forward.1} parent=5 // pred_fallthru
        _
    $region6: #{mlp_forward.1} parent=1 // loop_footer
      %s18 = sadd.s32 1, %s14
    $region7: #{mlp_forward.1} parent=1 // loop_footer_branch
      %13 = sbr.rel target = $region3
    $region8: #{mlp_forward.1} parent=1 // loop_exit
      _
    %396 = vsyncpa [#allocation4], 1
    %s397 = scalar_lea.sflag [#allocation4], 1
    %398 = vsyncpa %s397, 1
    %399 = vsyncpa [#allocation6], 1

</llo_original>
